<compile_context>
chip_gen: v7x
topology: tpu7x:2x2x1
jax: 0.10.0
libtpu: 0.0.40
codegen_flags: <defaults>
</compile_context>

<pallas_src>
import functools

import jax
import jax.numpy as jnp
from jax.experimental import pallas as pl
from jax.experimental.pallas import tpu as pltpu

_LANE = 128
_SUBLANE = 8


def _round_up(n, m):
    return ((n + m - 1) // m) * m


# ----------------------------------------------------------------------------
# Kernel: one fused (x @ W1_aug) -> LeakyReLU -> (h @ Wf_aug) -> * intensity
# Biases ride inside the augmented weights via the constant-1 carrier lane.
# ----------------------------------------------------------------------------
def adaptation_kernel(intensity_ref,  # SMEM (1,)        f32
                      x_ref,          # VMEM (TB, KP)    f32  (carrier lane at col F)
                      w1_ref,         # VMEM (KP, KP)    f32  (b1 folded in, carrier diag)
                      wf_ref,         # VMEM (KP, NP)    f32  (bf folded in)
                      out_ref):       # VMEM (TB, NP)    f32
    inten = intensity_ref[0]

    # block1: Linear(F -> F) + bias (via carrier) , then LeakyReLU(0.01).
    h = jnp.dot(x_ref[...], w1_ref[...], preferred_element_type=jnp.float32)
    h = jnp.where(h >= 0, h, jnp.float32(0.01) * h)   # carrier lane is 1 -> stays 1

    # fused lut|ada heads: Linear(F -> lut_dim + ada_dim) + bias (via carrier).
    out = jnp.dot(h, wf_ref[...], preferred_element_type=jnp.float32)

    # intensity scale rides in a free VALU slot; single lane-dense store.
    out_ref[...] = inten * out


# ----------------------------------------------------------------------------
# One-time parameter preparation (layout plumbing hoisted out of the hot path)
# ----------------------------------------------------------------------------
def prepare_params(params, feature_dim, lut_weight_dim, adaint_weight_dim):
    """Fold biases into the weights and lane-pad everything, once."""
    w1, b1, wl, bl, wa, ba = params
    lut_dim = lut_weight_dim[0] * lut_weight_dim[1]
    ada_dim = adaint_weight_dim[0] * adaint_weight_dim[1]
    fused_dim = lut_dim + ada_dim

    kp = _round_up(feature_dim + 1, _LANE)   # padded K (incl. bias carrier)
    np_ = _round_up(fused_dim, _LANE)        # padded fused output width

    w1_aug = jnp.zeros((kp, kp), jnp.float32)
    w1_aug = w1_aug.at[:feature_dim, :feature_dim].set(w1.astype(jnp.float32))
    w1_aug = w1_aug.at[feature_dim, :feature_dim].set(b1.astype(jnp.float32))
    w1_aug = w1_aug.at[feature_dim, feature_dim].set(1.0)   # carrier survives layer 1

    wf = jnp.concatenate([wl, wa], axis=1).astype(jnp.float32)
    bf = jnp.concatenate([bl, ba], axis=0).astype(jnp.float32)
    wf_aug = jnp.zeros((kp, np_), jnp.float32)
    wf_aug = wf_aug.at[:feature_dim, :fused_dim].set(wf)
    wf_aug = wf_aug.at[feature_dim, :fused_dim].set(bf)

    w1_aug = jax.device_put(w1_aug)
    wf_aug = jax.device_put(wf_aug)
    return w1_aug, wf_aug


def _cost(bp, kp, np_):
    flops = 2 * bp * kp * kp + 2 * bp * kp * np_
    bytes_accessed = 4 * (bp * kp + kp * kp + kp * np_ + bp * np_ + 1)
    return pl.CostEstimate(flops=flops, transcendentals=0,
                           bytes_accessed=bytes_accessed)


# ----------------------------------------------------------------------------
# Single-vector forward (matches AdaptationModule.forward semantics)
# ----------------------------------------------------------------------------
@functools.partial(jax.jit, static_argnames=("feature_dim", "lut_weight_dim",
                                             "adaint_weight_dim"))
def adaptation_forward(x, w1_aug, wf_aug, intensity, *, feature_dim,
                       lut_weight_dim, adaint_weight_dim):
    kp = w1_aug.shape[0]
    np_ = wf_aug.shape[1]
    lut_dim = lut_weight_dim[0] * lut_weight_dim[1]
    ada_dim = adaint_weight_dim[0] * adaint_weight_dim[1]

    x2 = jnp.zeros((1, kp), jnp.float32)
    x2 = x2.at[0, :feature_dim].set(jnp.asarray(x, jnp.float32))
    x2 = x2.at[0, feature_dim].set(1.0)                 # bias carrier lane
    inten = jnp.asarray(intensity, jnp.float32).reshape(1)

    vmem = pl.BlockSpec(memory_space=pltpu.MemorySpace.VMEM)
    smem = pl.BlockSpec(memory_space=pltpu.MemorySpace.SMEM)

    out = pl.pallas_call(
        adaptation_kernel,
        out_shape=jax.ShapeDtypeStruct((1, np_), jnp.float32),
        in_specs=[smem, vmem, vmem, vmem],
        out_specs=vmem,
        cost_estimate=_cost(1, kp, np_),
    )(inten, x2, w1_aug, wf_aug)

    lut = out[0, :lut_dim].reshape(lut_weight_dim)
    ada = out[0, lut_dim:lut_dim + ada_dim].reshape(adaint_weight_dim)
    return lut, ada


# ----------------------------------------------------------------------------
# Batched forward: (B, F) -> (B, *lut_dim), (B, *ada_dim)
# Amortizes kernel overhead; weights stay VMEM-resident across the grid;
# the batch axis is "parallel" so v7x's two TCs shard rows.
# ----------------------------------------------------------------------------
@functools.partial(jax.jit, static_argnames=("feature_dim", "lut_weight_dim",
                                             "adaint_weight_dim", "block_b"))
def adaptation_forward_batched(xb, w1_aug, wf_aug, intensity, *, feature_dim,
                               lut_weight_dim, adaint_weight_dim, block_b=128):
    b = xb.shape[0]
    kp = w1_aug.shape[0]
    np_ = wf_aug.shape[1]
    lut_dim = lut_weight_dim[0] * lut_weight_dim[1]
    ada_dim = adaint_weight_dim[0] * adaint_weight_dim[1]

    tb = min(block_b, _round_up(b, _SUBLANE))
    bp = _round_up(b, tb)

    x2 = jnp.zeros((bp, kp), jnp.float32)
    x2 = x2.at[:b, :feature_dim].set(jnp.asarray(xb, jnp.float32))
    x2 = x2.at[:b, feature_dim].set(1.0)                # bias carrier lane
    inten = jnp.asarray(intensity, jnp.float32).reshape(1)

    out = pl.pallas_call(
        adaptation_kernel,
        out_shape=jax.ShapeDtypeStruct((bp, np_), jnp.float32),
        grid=(bp // tb,),
        in_specs=[
            pl.BlockSpec(memory_space=pltpu.MemorySpace.SMEM),
            pl.BlockSpec((tb, kp), lambda i: (i, 0)),
            pl.BlockSpec((kp, kp), lambda i: (0, 0)),    # resident weights
            pl.BlockSpec((kp, np_), lambda i: (0, 0)),   # resident weights
        ],
        out_specs=pl.BlockSpec((tb, np_), lambda i: (i, 0)),
        compiler_params=pltpu.CompilerParams(dimension_semantics=("parallel",)),
        cost_estimate=_cost(bp, kp, np_),
    )(inten, x2, w1_aug, wf_aug)

    lut = out[:b, :lut_dim].reshape((b,) + tuple(lut_weight_dim))
    ada = out[:b, lut_dim:lut_dim + ada_dim].reshape((b,) + tuple(adaint_weight_dim))
    return lut, ada


# ----------------------------------------------------------------------------
# Parameter init + plain-JAX reference (for correctness checking)
# ----------------------------------------------------------------------------
def init_params(key, feature_dim, lut_dim, ada_dim):
    """uniform(0, 0.01) weights, zero biases (stored as (in, out))."""
    k1, k2, k3 = jax.random.split(key, 3)
    w1 = jax.random.uniform(k1, (feature_dim, feature_dim), jnp.float32, 0.0, 0.01)
    b1 = jnp.zeros((feature_dim,), jnp.float32)
    wl = jax.random.uniform(k2, (feature_dim, lut_dim), jnp.float32, 0.0, 0.01)
    bl = jnp.zeros((lut_dim,), jnp.float32)
    wa = jax.random.uniform(k3, (feature_dim, ada_dim), jnp.float32, 0.0, 0.01)
    ba = jnp.zeros((ada_dim,), jnp.float32)
    return (w1, b1, wl, bl, wa, ba)


def reference_forward(x, params, lut_weight_dim, adaint_weight_dim, intensity=1.0):
    w1, b1, wl, bl, wa, ba = params
    xf = jnp.asarray(x, jnp.float32)
    h = xf @ w1 + b1
    h = jnp.where(h >= 0, h, 0.01 * h)
    lut = (h @ wl + bl).reshape(lut_weight_dim)
    ada = (h @ wa + ba).reshape(adaint_weight_dim)
    return intensity * lut, intensity * ada


if __name__ == "__main__":
    # Small synthetic config: args.n_ranks=3, args.n_vertices=9, args.n_colors=3
    feature_dim = 32
    n_feats = 8
    n_ranks = 3
    n_vertices = 9
    n_colors = 3

    lut_weight_dim = (n_ranks, n_feats)                         # (3, 8)   -> 24
    adaint_weight_dim = ((n_vertices - 1) * n_colors, n_feats)  # (24, 8)  -> 192
    lut_dim = lut_weight_dim[0] * lut_weight_dim[1]
    ada_dim = adaint_weight_dim[0] * adaint_weight_dim[1]

    key = jax.random.PRNGKey(0)
    kx, kp, kb = jax.random.split(key, 3)
    x = jax.random.normal(kx, (feature_dim,), jnp.float32)
    params = init_params(kp, feature_dim, lut_dim, ada_dim)

    # One-time parameter preparation (hoisted out of the per-call hot path).
    w1_aug, wf_aug = prepare_params(params, feature_dim,
                                    lut_weight_dim, adaint_weight_dim)

    # --- single-vector path (module semantics) ---
    lut_out, ada_out = adaptation_forward(
        x, w1_aug, wf_aug, jnp.float32(1.0),
        feature_dim=feature_dim, lut_weight_dim=lut_weight_dim,
        adaint_weight_dim=adaint_weight_dim)
    jax.block_until_ready((lut_out, ada_out))

    lut_ref, ada_ref = reference_forward(x, params, lut_weight_dim,
                                         adaint_weight_dim, intensity=1.0)
    assert lut_out.shape == lut_weight_dim
    assert ada_out.shape == adaint_weight_dim
    assert jnp.allclose(lut_out, lut_ref, atol=1e-5, rtol=1e-5)
    assert jnp.allclose(ada_out, ada_ref, atol=1e-5, rtol=1e-5)

    # Non-unit intensity covers the in-kernel scale path.
    lut2, ada2 = adaptation_forward(
        x, w1_aug, wf_aug, jnp.float32(0.5),
        feature_dim=feature_dim, lut_weight_dim=lut_weight_dim,
        adaint_weight_dim=adaint_weight_dim)
    lut2_ref, ada2_ref = reference_forward(x, params, lut_weight_dim,
                                           adaint_weight_dim, intensity=0.5)
    jax.block_until_ready((lut2, ada2))
    assert jnp.allclose(lut2, lut2_ref, atol=1e-5, rtol=1e-5)
    assert jnp.allclose(ada2, ada2_ref, atol=1e-5, rtol=1e-5)

    # --- batched path (amortizes dispatch / DMA overhead) ---
    B = 16
    xb = jax.random.normal(kb, (B, feature_dim), jnp.float32)
    lut_b, ada_b = adaptation_forward_batched(
        xb, w1_aug, wf_aug, jnp.float32(0.75),
        feature_dim=feature_dim, lut_weight_dim=lut_weight_dim,
        adaint_weight_dim=adaint_weight_dim)
    jax.block_until_ready((lut_b, ada_b))
    assert lut_b.shape == (B,) + lut_weight_dim
    assert ada_b.shape == (B,) + adaint_weight_dim
    for i in range(B):
        lr, ar = reference_forward(xb[i], params, lut_weight_dim,
                                   adaint_weight_dim, intensity=0.75)
        assert jnp.allclose(lut_b[i], lr, atol=1e-5, rtol=1e-5)
        assert jnp.allclose(ada_b[i], ar, atol=1e-5, rtol=1e-5)

    print("KERNEL_OK")
</pallas_src>

<mosaic_0001>
module attributes {stable_mosaic.version = 11 : i64} {
  func.func @adaptation_kernel(%arg0: memref<1xf32, #tpu.memory_space<smem>>, %arg1: memref<1x128xf32, #tpu.memory_space<vmem>>, %arg2: memref<128x128xf32, #tpu.memory_space<vmem>>, %arg3: memref<128x256xf32, #tpu.memory_space<vmem>>, %arg4: memref<1x256xf32, #tpu.memory_space<vmem>>) attributes {dimension_semantics = [], scalar_prefetch = 0 : i64, scratch_operands = 0 : i64, tpu.core_type = #tpu.core_type<tc>} {
    %c0 = arith.constant 0 : index
    %0 = memref.load %arg0[%c0] : memref<1xf32, #tpu.memory_space<smem>>
    %c0_0 = arith.constant 0 : index
    %c0_1 = arith.constant 0 : index
    %1 = vector.load %arg1[%c0_0, %c0_1] : memref<1x128xf32, #tpu.memory_space<vmem>>, vector<1x128xf32>
    %c0_2 = arith.constant 0 : index
    %c0_3 = arith.constant 0 : index
    %2 = vector.load %arg2[%c0_2, %c0_3] : memref<128x128xf32, #tpu.memory_space<vmem>>, vector<128x128xf32>
    %cst = arith.constant dense<0.000000e+00> : vector<1x128xf32>
    %3 = tpu.matmul %1, %2, %cst {dimension_numbers = #tpu.dot_dimension_numbers<[1], [0], [0], [1], [0, 0, 1, 1], [], []>} : vector<1x128xf32>, vector<128x128xf32>, vector<1x128xf32> -> vector<1x128xf32>
    %cst_4 = arith.constant 0.000000e+00 : f32
    %4 = vector.broadcast %cst_4 : f32 to vector<1x128xf32>
    %5 = arith.cmpf oge, %3, %4 : vector<1x128xf32>
    %cst_5 = arith.constant 0.00999999977 : f32
    %6 = vector.broadcast %cst_5 : f32 to vector<1x128xf32>
    %7 = arith.mulf %6, %3 : vector<1x128xf32>
    %8 = arith.select %5, %3, %7 : vector<1x128xi1>, vector<1x128xf32>
    %c0_6 = arith.constant 0 : index
    %c0_7 = arith.constant 0 : index
    %9 = vector.load %arg3[%c0_6, %c0_7] : memref<128x256xf32, #tpu.memory_space<vmem>>, vector<128x256xf32>
    %cst_8 = arith.constant dense<0.000000e+00> : vector<1x256xf32>
    %10 = tpu.matmul %8, %9, %cst_8 {dimension_numbers = #tpu.dot_dimension_numbers<[1], [0], [0], [1], [0, 0, 1, 1], [], []>} : vector<1x128xf32>, vector<128x256xf32>, vector<1x256xf32> -> vector<1x256xf32>
    %11 = vector.broadcast %0 : f32 to vector<1x256xf32>
    %12 = arith.mulf %11, %10 : vector<1x256xf32>
    %c0_9 = arith.constant 0 : index
    %c0_10 = arith.constant 0 : index
    %13 = vector.load %arg4[%c0_9, %c0_10] : memref<1x256xf32, #tpu.memory_space<vmem>>, vector<1x256xf32>
    tpu.vector_store %arg4[%c0_9, %c0_10], %12 {strides = array<i32>} : memref<1x256xf32, #tpu.memory_space<vmem>>, vector<1x256xf32>,
    return
  }
}

</mosaic_0001>

<llo_original>
// kernel: squeeze.3
$region0: #{squeeze.3}
  %s0 = inlined_call_operand.vmem [shape: f32[192], index: 0, kind: input, shape index: {}]
  %s1 = inlined_call_operand.vmem [shape: f32[24,8], index: 1, kind: output, shape index: {}]
  $region1: #{squeeze.3} parent=0
    #allocation0 [shape = 'u8[4096]{0}', space=vmem, size = 0x1000, scoped, tag = 'scoped mem for input reshape']
    %s3 = sshllo.u32 0, 2
    %v4 = vld [vmem:[%s0] sm:%s3]
    %5 = vst [vmem:[#allocation0] sm:%s3] %v4
    %v6 = vld [vmem:[#allocation0] sm:$0x3]
    %vm7 = vcmask 64512
    %8 = vst.msk [vmem:[%s1] ss:$16 sm:$0x3] %vm7, %v6
    %v9 = vld [vmem:[#allocation0] sm:$0x3]
    %10 = vrot.lane.b32.xlu0 %v9, 120
    %v11 = vpop.permute.xlu0 %10
    %vm12 = vcmask 64512
    %s13 = scalar_lea.vmem %s1, 1
    %14 = vst.msk [vmem:[%s13] ss:$16 sm:$0x3] %vm12, %v11
    %v15 = vld [vmem:[#allocation0] sm:$0x3]
    %16 = vrot.lane.b32.xlu0 %v15, 112
    %v17 = vpop.permute.xlu0 %16
    %vm18 = vcmask 64512
    %s19 = scalar_lea.vmem %s1, 2
    %20 = vst.msk [vmem:[%s19] ss:$16 sm:$0x3] %vm18, %v17
    %v21 = vld [vmem:[#allocation0] sm:$0x3]
    %22 = vrot.lane.b32.xlu0 %v21, 104
    %v23 = vpop.permute.xlu0 %22
    %vm24 = vcmask 64512
    %s25 = scalar_lea.vmem %s1, 3
    %26 = vst.msk [vmem:[%s25] ss:$16 sm:$0x3] %vm24, %v23
    %v27 = vld [vmem:[#allocation0] sm:$0x3]
    %28 = vrot.lane.b32.xlu0 %v27, 96
    %v29 = vpop.permute.xlu0 %28
    %vm30 = vcmask 64512
    %s31 = scalar_lea.vmem %s1, 4
    %32 = vst.msk [vmem:[%s31] ss:$16 sm:$0x3] %vm30, %v29
    %v33 = vld [vmem:[#allocation0] sm:$0x3]
    %34 = vrot.lane.b32.xlu0 %v33, 88
    %v35 = vpop.permute.xlu0 %34
    %vm36 = vcmask 64512
    %s37 = scalar_lea.vmem %s1, 5
    %38 = vst.msk [vmem:[%s37] ss:$16 sm:$0x3] %vm36, %v35
    %v39 = vld [vmem:[#allocation0] sm:$0x3]
    %40 = vrot.lane.b32.xlu0 %v39, 80
    %v41 = vpop.permute.xlu0 %40
    %vm42 = vcmask 64512
    %s43 = scalar_lea.vmem %s1, 6
    %44 = vst.msk [vmem:[%s43] ss:$16 sm:$0x3] %vm42, %v41
    %v45 = vld [vmem:[#allocation0] sm:$0x3]
    %46 = vrot.lane.b32.xlu0 %v45, 72
    %v47 = vpop.permute.xlu0 %46
    %vm48 = vcmask 64512
    %s49 = scalar_lea.vmem %s1, 7
    %50 = vst.msk [vmem:[%s49] ss:$16 sm:$0x3] %vm48, %v47
    %v51 = vld [vmem:[#allocation0] sm:$0x1]
    %52 = vrot.lane.b32.xlu0 %v51, 64
    %v53 = vpop.permute.xlu0 %52
    %vm54 = vcmask 64512
    %s55 = scalar_lea.vmem %s1, 8
    %56 = vst.msk [vmem:[%s55] sm:$0x1] %vm54, %v53
    %v57 = vld [vmem:[#allocation0] sm:$0x1]
    %58 = vrot.lane.b32.xlu0 %v57, 56
    %v59 = vpop.permute.xlu0 %58
    %vm60 = vcmask 64512
    %s61 = scalar_lea.vmem %s1, 9
    %62 = vst.msk [vmem:[%s61] sm:$0x1] %vm60, %v59
    %v63 = vld [vmem:[#allocation0] sm:$0x1]
    %64 = vrot.lane.b32.xlu0 %v63, 48
    %v65 = vpop.permute.xlu0 %64
    %vm66 = vcmask 64512
    %s67 = scalar_lea.vmem %s1, 10
    %68 = vst.msk [vmem:[%s67] sm:$0x1] %vm66, %v65
    %v69 = vld [vmem:[#allocation0] sm:$0x1]
    %70 = vrot.lane.b32.xlu0 %v69, 40
    %v71 = vpop.permute.xlu0 %70
    %vm72 = vcmask 64512
    %s73 = scalar_lea.vmem %s1, 11
    %74 = vst.msk [vmem:[%s73] sm:$0x1] %vm72, %v71
    %v75 = vld [vmem:[#allocation0] sm:$0x1]
    %76 = vrot.lane.b32.xlu0 %v75, 32
    %v77 = vpop.permute.xlu0 %76
    %vm78 = vcmask 64512
    %s79 = scalar_lea.vmem %s1, 12
    %80 = vst.msk [vmem:[%s79] sm:$0x1] %vm78, %v77
    %v81 = vld [vmem:[#allocation0] sm:$0x1]
    %82 = vrot.lane.b32.xlu0 %v81, 24
    %v83 = vpop.permute.xlu0 %82
    %vm84 = vcmask 64512
    %s85 = scalar_lea.vmem %s1, 13
    %86 = vst.msk [vmem:[%s85] sm:$0x1] %vm84, %v83
    %v87 = vld [vmem:[#allocation0] sm:$0x1]
    %88 = vrot.lane.b32.xlu0 %v87, 16
    %v89 = vpop.permute.xlu0 %88
    %vm90 = vcmask 64512
    %s91 = scalar_lea.vmem %s1, 14
    %92 = vst.msk [vmem:[%s91] sm:$0x1] %vm90, %v89
    %v93 = vld [vmem:[#allocation0] sm:$0x1]
    %94 = vrot.lane.b32.xlu0 %v93, 8
    %v95 = vpop.permute.xlu0 %94
    %vm96 = vcmask 64512
    %s97 = scalar_lea.vmem %s1, 15
    %98 = vst.msk [vmem:[%s97] sm:$0x1] %vm96, %v95

// kernel: squeeze.2
$region0: #{squeeze.2}
  %s0 = inlined_call_operand.vmem [shape: f32[24], index: 0, kind: input, shape index: {}]
  %s1 = inlined_call_operand.hbm [shape: f32[3,8], index: 1, kind: output, shape index: {}]
  $region1: #{squeeze.2} parent=0
    #allocation0 [shape = 'u8[2048]{0}', space=vmem, size = 0x800, scoped, tag = 'operand span for operand 1']
    #allocation1 [shape = 's32[1]{0}', space=sflag, size = 0x4, scoped, tag = 'scoped memory for squeeze.2']
    #allocation2 [shape = 'u8[4096]{0}', space=vmem, size = 0x1000, scoped, tag = 'scoped mem for output reshape']
    #allocation3 [shape = 'u8[4096]{0}', space=vmem, size = 0x1000, scoped, tag = 'scoped mem for input reshape']
    %2 = vsyncpa [#allocation1], 0
    %s4 = sshllo.u32 0, 1
    %v5 = vld [vmem:[%s0] sm:%s4]
    %6 = vst [vmem:[#allocation3] sm:%s4] %v5
    %v7 = vld [vmem:[#allocation3] sm:$0x1]
    %vm8 = vcmask 64512
    %9 = vst.msk [vmem:[#allocation2] sm:$0x1] %vm8, %v7
    %v10 = vld [vmem:[#allocation3] sm:$0x1]
    %11 = vrot.lane.b32.xlu0 %v10, 120
    %v12 = vpop.permute.xlu0 %11
    %vm13 = vcmask 64512
    %s14 = scalar_lea.vmem [#allocation2], 1
    %15 = vst.msk [vmem:[%s14] sm:$0x1] %vm13, %v12
    %v16 = vld [vmem:[#allocation3] sm:$0x1]
    %17 = vrot.lane.b32.xlu0 %v16, 112
    %v18 = vpop.permute.xlu0 %17
    %vm19 = vcmask 64512
    %s20 = scalar_lea.vmem [#allocation2], 2
    %21 = vst.msk [vmem:[%s20] sm:$0x1] %vm19, %v18
    %s23 = sshllo.u32 0, 4
    %v25 = vld [vmem:[#allocation2] sm:%s23]
    %s26 = sshllo.u32 0, 4
    %27 = vst [vmem:[#allocation0] sm:%s26] %v25
    %s29 = ssub.s32 64, 64
    %30 = vsyncadd [#allocation1], %s29
    %s32 = sshll.u32 [#allocation0], 4
    %s33 = int_to_ptr.vmem [resolvable:$true] %s32
    %35 = dma.vmem_to_hbm [thread:$0]  %s33, 64, %s1, [#allocation1]
    %36 = dma.done [#allocation1], 64
    %37 = vsyncpa [#allocation1], 1

// kernel: adaptation_forward.1
$region0: #{adaptation_forward.1}
  #allocation0 [shape = 'u32[]', space=smem, size = 0x4, offset = 0x4, fixed_abs, tag = 'smem constant byte address 0x4 - core index']
  #allocation1 [shape = 'u32[144,128]{1,0:T(1,128)}', space=vmem, size = 0x12000, scoped, tag = 'internal scratch']
  #allocation2 [shape = 'f32[1]{0:T(128)S(6)}', space=smem, size = 0x200, scoped, tag = 'scoped memory for adaptation_forward.1']
  %s0 = inlined_call_operand.<no memory space> [shape: f32[1], index: 0, kind: input, shape index: {}]
  %s1 = inlined_call_operand.vmem [shape: f32[1,128], index: 1, kind: input, shape index: {}]
  %s2 = inlined_call_operand.hbm [shape: f32[128,128], index: 2, kind: input, shape index: {}]
  %s3 = inlined_call_operand.hbm [shape: f32[128,256], index: 3, kind: input, shape index: {}]
  %s4 = inlined_call_operand.vmem [shape: f32[1,256], index: 4, kind: output, shape index: {}]
  %s5 = sld [smem:[#allocation0]]
  $region34: #{adaptation_forward.1} parent=0
    _
  %s7 = ssub.s32 1, %s5
  %s8 = scalar_select 0, %s7, %s5
  %9 = sst [smem:[#allocation2]] %s0
  $region1: #{adaptation_forward.1} parent=0
    #allocation3 [shape = 'u8[65536]{0}', space=vmem, size = 0x10000, scoped, tag = 'input window, operand 2, single buffered']
    #allocation4 [shape = 's32[1]{0}', space=sflag, size = 0x4, scoped, tag = 'scoped memory for adaptation_forward.1']
    #allocation5 [shape = 'u8[131072]{0}', space=vmem, size = 0x20000, scoped, tag = 'input window, operand 3, single buffered']
    #allocation6 [shape = 's32[1]{0}', space=sflag, size = 0x4, scoped, tag = 'scoped memory for adaptation_forward.1']
    %10 = vsyncpa [#allocation4], 0
    %11 = vsyncpa [#allocation6], 0
    // Predicated region
    $region2: #{adaptation_forward.1} parent=1 // pred_check
      _
    $region3: #{adaptation_forward.1} parent=1 // pred_check_branch
      %13 = sbr.rel (0) target = $region5
    $region4: #{adaptation_forward.1} parent=1 // pred_region
      _
    $region5: #{adaptation_forward.1} parent=1 // pred_fallthru
      _
    // Predicated region
    $region6: #{adaptation_forward.1} parent=1 // pred_check
      _
    $region7: #{adaptation_forward.1} parent=1 // pred_check_branch
      %15 = sbr.rel (0) target = $region9
    $region8: #{adaptation_forward.1} parent=1 // pred_region
      _
    $region9: #{adaptation_forward.1} parent=1 // pred_fallthru
      _
    // Predicated region
    $region10: #{adaptation_forward.1} parent=1 // pred_check
      _
    $region11: #{adaptation_forward.1} parent=1 // pred_check_branch
      %17 = sbr.rel (0) target = $region13
    $region12: #{adaptation_forward.1} parent=1 // pred_region
      %s19 = ssub.s32 2048, 2048
      %20 = vsyncadd [#allocation4], %s19
      %s21 = sshll.u32 [#allocation3], 4
      %s22 = int_to_ptr.vmem [resolvable:$true] %s21
      %27 = dma.hbm_to_vmem [thread:$0]  %s2, 2048, %s22, [#allocation4], 128, 128, 8
    $region13: #{adaptation_forward.1} parent=1 // pred_fallthru
      _
    // Predicated region
    $region14: #{adaptation_forward.1} parent=1 // pred_check
      _
    $region15: #{adaptation_forward.1} parent=1 // pred_check_branch
      %29 = sbr.rel (0) target = $region17
    $region16: #{adaptation_forward.1} parent=1 // pred_region
      %s31 = ssub.s32 4096, 4096
      %32 = vsyncadd [#allocation6], %s31
      %s33 = sshll.u32 [#allocation5], 4
      %s34 = int_to_ptr.vmem [resolvable:$true] %s33
      %39 = dma.hbm_to_vmem [thread:$0]  %s3, 4096, %s34, [#allocation6], 256, 256, 16
    $region17: #{adaptation_forward.1} parent=1 // pred_fallthru
      _
    // Predicated region
    $region18: #{adaptation_forward.1} parent=1 // pred_check
      _
    $region19: #{adaptation_forward.1} parent=1 // pred_check_branch
      %41 = sbr.rel (0) target = $region21
    $region20: #{adaptation_forward.1} parent=1 // pred_region
      %42 = dma.done [#allocation4], 2048
    $region21: #{adaptation_forward.1} parent=1 // pred_fallthru
      _
    // Predicated region
    $region22: #{adaptation_forward.1} parent=1 // pred_check
      _
    $region23: #{adaptation_forward.1} parent=1 // pred_check_branch
      %44 = sbr.rel (0) target = $region25
    $region24: #{adaptation_forward.1} parent=1 // pred_region
      %45 = dma.done [#allocation6], 4096
    $region25: #{adaptation_forward.1} parent=1 // pred_fallthru
      _
    %s46 = sld [smem:[#allocation2]]
    %v47 = vld [vmem:[%s1] sm:$0x1]
    %v48 = vld [vmem:[#allocation3] sm:$0xff]
    %v49 = vld [vmem:[#allocation3 + $0x8] sm:$0xff]
    %v50 = vld [vmem:[#allocation3 + $0x10] sm:$0xff]
    %v51 = vld [vmem:[#allocation3 + $0x18] sm:$0xff]
    %v52 = vld [vmem:[#allocation3 + $0x20] sm:$0xff]
    %v53 = vld [vmem:[#allocation3 + $0x28] sm:$0xff]
    %v54 = vld [vmem:[#allocation3 + $0x30] sm:$0xff]
    %v55 = vld [vmem:[#allocation3 + $0x38] sm:$0xff]
    %v56 = vld [vmem:[#allocation3 + $0x40] sm:$0xff]
    %v57 = vld [vmem:[#allocation3 + $0x48] sm:$0xff]
    %v58 = vld [vmem:[#allocation3 + $0x50] sm:$0xff]
    %v59 = vld [vmem:[#allocation3 + $0x58] sm:$0xff]
    %v60 = vld [vmem:[#allocation3 + $0x60] sm:$0xff]
    %v61 = vld [vmem:[#allocation3 + $0x68] sm:$0xff]
    %v62 = vld [vmem:[#allocation3 + $0x70] sm:$0xff]
    %v63 = vld [vmem:[#allocation3 + $0x78] sm:$0xff]
    %64 = vmatprep.subr.mxu0 0.0
    %65 = vmatpush1.msra.mxu0 %v48
    %66 = vmatprep.subr.mxu0 0.0
    %67 = vmatpush1.msra.mxu0 %v49
    %68 = vmatprep.subr.mxu0 0.0
    %69 = vmatpush1.msra.mxu0 %v50
    %70 = vmatprep.subr.mxu0 0.0
    %71 = vmatpush1.msra.mxu0 %v51
    %72 = vmatprep.subr.mxu0 0.0
    %73 = vmatpush1.msra.mxu0 %v52
    %74 = vmatprep.subr.mxu0 0.0
    %75 = vmatpush1.msra.mxu0 %v53
    %76 = vmatprep.subr.mxu0 0.0
    %77 = vmatpush1.msra.mxu0 %v54
    %78 = vmatprep.subr.mxu0 0.0
    %79 = vmatpush1.msra.mxu0 %v55
    %80 = vmatprep.subr.mxu0 0.0
    %81 = vmatpush1.msra.mxu0 %v56
    %82 = vmatprep.subr.mxu0 0.0
    %83 = vmatpush1.msra.mxu0 %v57
    %84 = vmatprep.subr.mxu0 0.0
    %85 = vmatpush1.msra.mxu0 %v58
    %86 = vmatprep.subr.mxu0 0.0
    %87 = vmatpush1.msra.mxu0 %v59
    %88 = vmatprep.subr.mxu0 0.0
    %89 = vmatpush1.msra.mxu0 %v60
    %90 = vmatprep.subr.mxu0 0.0
    %91 = vmatpush1.msra.mxu0 %v61
    %92 = vmatprep.subr.mxu0 0.0
    %93 = vmatpush1.msra.mxu0 %v62
    %94 = vmatprep.subr.mxu0 0.0
    %95 = vmatpush1.msra.mxu0 %v63
    %96 = vmatprep.subr.mxu0 0.0
    %97 = vmatpush1.msra.mxu0 0.0
    %98 = vmatprep.subr.mxu0 0.0
    %99 = vmatpush1.msra.mxu0 0.0
    %100 = vmatprep.subr.mxu0 0.0
    %101 = vmatpush1.msra.mxu0 0.0
    %102 = vmatprep.subr.mxu0 0.0
    %103 = vmatpush1.msra.mxu0 0.0
    %104 = vmatprep.subr.mxu0 0.0
    %105 = vmatpush1.msra.mxu0 0.0
    %106 = vmatprep.subr.mxu0 0.0
    %107 = vmatpush1.msra.mxu0 0.0
    %108 = vmatprep.subr.mxu0 0.0
    %109 = vmatpush1.msra.mxu0 0.0
    %110 = vmatprep.subr.mxu0 0.0
    %111 = vmatpush1.msra.mxu0 0.0
    %112 = vmatprep.subr.mxu0 0.0
    %113 = vmatpush1.msra.mxu0 0.0
    %114 = vmatprep.subr.mxu0 0.0
    %115 = vmatpush1.msra.mxu0 0.0
    %116 = vmatprep.subr.mxu0 0.0
    %117 = vmatpush1.msra.mxu0 0.0
    %118 = vmatprep.subr.mxu0 0.0
    %119 = vmatpush1.msra.mxu0 0.0
    %120 = vmatprep.subr.mxu0 0.0
    %121 = vmatpush1.msra.mxu0 0.0
    %122 = vmatprep.subr.mxu0 0.0
    %123 = vmatpush1.msra.mxu0 0.0
    %124 = vmatprep.subr.mxu0 0.0
    %125 = vmatpush1.msra.mxu0 0.0
    %126 = vmatprep.subr.mxu0 0.0
    %127 = vmatpush1.msra.mxu0 0.0
    %128 = vmatprep.mubr.f32.mxu0 0.0
    %129 = vmatmul.mubr.f32.gmra.mrb[0].mxu0 %v47
    %v130 = vpop.f32.mrb[0].mxu0
    %v131 = vadd.f32 0.0, %v130
    %v132 = vpop.f32.mrb[0].mxu0
    %133 = vdwg.mxu0
    %vm134 = vcmp.ge.f32.partialorder %v131, 0.0
    %v135 = vmul.f32 %v131, 0.01
    %v136 = vsel %vm134, %v131, %v135
    %v137 = vld [vmem:[#allocation5] sm:$0xff]
    %v138 = vld [vmem:[#allocation5 + $0x8] sm:$0xff]
    %v139 = vld [vmem:[#allocation5 + $0x10] sm:$0xff]
    %v140 = vld [vmem:[#allocation5 + $0x18] sm:$0xff]
    %v141 = vld [vmem:[#allocation5 + $0x20] sm:$0xff]
    %v142 = vld [vmem:[#allocation5 + $0x28] sm:$0xff]
    %v143 = vld [vmem:[#allocation5 + $0x30] sm:$0xff]
    %v144 = vld [vmem:[#allocation5 + $0x38] sm:$0xff]
    %v145 = vld [vmem:[#allocation5 + $0x40] sm:$0xff]
    %v146 = vld [vmem:[#allocation5 + $0x48] sm:$0xff]
    %v147 = vld [vmem:[#allocation5 + $0x50] sm:$0xff]
    %v148 = vld [vmem:[#allocation5 + $0x58] sm:$0xff]
    %v149 = vld [vmem:[#allocation5 + $0x60] sm:$0xff]
    %v150 = vld [vmem:[#allocation5 + $0x68] sm:$0xff]
    %v151 = vld [vmem:[#allocation5 + $0x70] sm:$0xff]
    %v152 = vld [vmem:[#allocation5 + $0x78] sm:$0xff]
    %v153 = vld [vmem:[#allocation5 + $0x80] sm:$0xff]
    %v154 = vld [vmem:[#allocation5 + $0x88] sm:$0xff]
    %v155 = vld [vmem:[#allocation5 + $0x90] sm:$0xff]
    %v156 = vld [vmem:[#allocation5 + $0x98] sm:$0xff]
    %v157 = vld [vmem:[#allocation5 + $0xa0] sm:$0xff]
    %v158 = vld [vmem:[#allocation5 + $0xa8] sm:$0xff]
    %v159 = vld [vmem:[#allocation5 + $0xb0] sm:$0xff]
    %v160 = vld [vmem:[#allocation5 + $0xb8] sm:$0xff]
    %v161 = vld [vmem:[#allocation5 + $0xc0] sm:$0xff]
    %v162 = vld [vmem:[#allocation5 + $0xc8] sm:$0xff]
    %v163 = vld [vmem:[#allocation5 + $0xd0] sm:$0xff]
    %v164 = vld [vmem:[#allocation5 + $0xd8] sm:$0xff]
    %v165 = vld [vmem:[#allocation5 + $0xe0] sm:$0xff]
    %v166 = vld [vmem:[#allocation5 + $0xe8] sm:$0xff]
    %v167 = vld [vmem:[#allocation5 + $0xf0] sm:$0xff]
    %v168 = vld [vmem:[#allocation5 + $0xf8] sm:$0xff]
    %169 = vmatprep.subr.mxu0 %v138
    %170 = vmatpush1.msra.mxu0 %v137
    %171 = vmatprep.subr.mxu0 %v140
    %172 = vmatpush1.msra.mxu0 %v139
    %173 = vmatprep.subr.mxu0 %v142
    %174 = vmatpush1.msra.mxu0 %v141
    %175 = vmatprep.subr.mxu0 %v144
    %176 = vmatpush1.msra.mxu0 %v143
    %177 = vmatprep.subr.mxu0 %v146
    %178 = vmatpush1.msra.mxu0 %v145
    %179 = vmatprep.subr.mxu0 %v148
    %180 = vmatpush1.msra.mxu0 %v147
    %181 = vmatprep.subr.mxu0 %v150
    %182 = vmatpush1.msra.mxu0 %v149
    %183 = vmatprep.subr.mxu0 %v152
    %184 = vmatpush1.msra.mxu0 %v151
    %185 = vmatprep.subr.mxu0 %v154
    %186 = vmatpush1.msra.mxu0 %v153
    %187 = vmatprep.subr.mxu0 %v156
    %188 = vmatpush1.msra.mxu0 %v155
    %189 = vmatprep.subr.mxu0 %v158
    %190 = vmatpush1.msra.mxu0 %v157
    %191 = vmatprep.subr.mxu0 %v160
    %192 = vmatpush1.msra.mxu0 %v159
    %193 = vmatprep.subr.mxu0 %v162
    %194 = vmatpush1.msra.mxu0 %v161
    %195 = vmatprep.subr.mxu0 %v164
    %196 = vmatpush1.msra.mxu0 %v163
    %197 = vmatprep.subr.mxu0 %v166
    %198 = vmatpush1.msra.mxu0 %v165
    %199 = vmatprep.subr.mxu0 %v168
    %200 = vmatpush1.msra.mxu0 %v167
    %201 = vmatprep.subr.mxu0 0.0
    %202 = vmatpush1.msra.mxu0 0.0
    %203 = vmatprep.subr.mxu0 0.0
    %204 = vmatpush1.msra.mxu0 0.0
    %205 = vmatprep.subr.mxu0 0.0
    %206 = vmatpush1.msra.mxu0 0.0
    %207 = vmatprep.subr.mxu0 0.0
    %208 = vmatpush1.msra.mxu0 0.0
    %209 = vmatprep.subr.mxu0 0.0
    %210 = vmatpush1.msra.mxu0 0.0
    %211 = vmatprep.subr.mxu0 0.0
    %212 = vmatpush1.msra.mxu0 0.0
    %213 = vmatprep.subr.mxu0 0.0
    %214 = vmatpush1.msra.mxu0 0.0
    %215 = vmatprep.subr.mxu0 0.0
    %216 = vmatpush1.msra.mxu0 0.0
    %217 = vmatprep.subr.mxu0 0.0
    %218 = vmatpush1.msra.mxu0 0.0
    %219 = vmatprep.subr.mxu0 0.0
    %220 = vmatpush1.msra.mxu0 0.0
    %221 = vmatprep.subr.mxu0 0.0
    %222 = vmatpush1.msra.mxu0 0.0
    %223 = vmatprep.subr.mxu0 0.0
    %224 = vmatpush1.msra.mxu0 0.0
    %225 = vmatprep.subr.mxu0 0.0
    %226 = vmatpush1.msra.mxu0 0.0
    %227 = vmatprep.subr.mxu0 0.0
    %228 = vmatpush1.msra.mxu0 0.0
    %229 = vmatprep.subr.mxu0 0.0
    %230 = vmatpush1.msra.mxu0 0.0
    %231 = vmatprep.subr.mxu0 0.0
    %232 = vmatpush1.msra.mxu0 0.0
    %233 = vmatprep.mubr.f32.mxu0 0.0
    %234 = vmatmul.mubr.f32.gmra.mrb[0].mxu0 %v136
    %v235 = vpop.f32.mrb[0].mxu0
    %v236 = vadd.f32 0.0, %v235
    %v237 = vpop.f32.mrb[0].mxu0
    %v238 = vadd.f32 0.0, %v237
    %239 = vdwg.mxu0
    %v240 = vstv %s46
    %v241 = vmul.f32 %v240, %v236
    %v242 = vmul.f32 %v240, %v238
    %v245 = vcombine.low %v241, %v242
    %v247 = vunpack.c.l.s4 1966171168
    %v248 = vunpack.c.0.s8 %v247
    %v249 = vlaneseq
    %v250 = vshrl.u32 %v249, 7
    %v251 = vsub.s32 %v248, %v250
    %v252 = vrot.slane %v245, %v251
    %v254 = vunpack.c.l.s4 1966171168
    %v255 = vunpack.c.0.s8 %v254
    %v256 = vlaneseq
    %v257 = vshrl.u32 %v256, 7
    %v258 = vsub.s32 %v255, %v257
    %v259 = vrot.slane %v252, %v258
    %v261 = vlaneseq
    %vm262 = vcmp.ge.s32.totalorder %v261, 0
    %vm263 = vcmp.lt.s32.totalorder %v261, 256
    %vm264 = vmand %vm262, %vm263
    %265 = vst.msk [vmem:[%s4] sm:$0x3] %vm264, %v259
    // Predicated region
    $region26: #{adaptation_forward.1} parent=1 // pred_check
      _
    $region27: #{adaptation_forward.1} parent=1 // pred_check_branch
      %267 = sbr.rel (0) target = $region29
    $region28: #{adaptation_forward.1} parent=1 // pred_region
      _
    $region29: #{adaptation_forward.1} parent=1 // pred_fallthru
      _
    // Predicated region
    $region30: #{adaptation_forward.1} parent=1 // pred_check
      _
    $region31: #{adaptation_forward.1} parent=1 // pred_check_branch
      %269 = sbr.rel (0) target = $region33
    $region32: #{adaptation_forward.1} parent=1 // pred_region
      _
    $region33: #{adaptation_forward.1} parent=1 // pred_fallthru
      _
    %270 = vsyncpa [#allocation4], 1
    %271 = vsyncpa [#allocation6], 1

</llo_original>
